<compile_context>
chip_gen: v7x
topology: tpu7x:2x2x1
jax: 0.10.0
libtpu: 0.0.40
codegen_flags: <defaults>
</compile_context>

<pallas_src>
import math
from functools import partial

import jax
import jax.numpy as jnp
from jax import lax
from jax.experimental import pallas as pl
from jax.experimental.pallas import tpu as pltpu


# --------------------------- pass 1: K/V projection --------------------------

def _kv_proj_kernel(x_ref, pkT_ref, wk_ref, *rest, one_kv_head, share_kv):
    if share_kv:
        k_ref, k_acc = rest
        pvT_ref = wv_ref = v_ref = v_acc = None
    else:
        pvT_ref, wv_ref, k_ref, v_ref, k_acc, v_acc = rest

    c = pl.program_id(1)
    nc = pl.num_programs(1)
    cdt = x_ref.dtype
    # Multi-head KV (kv_dim ~ d): project the sequence first (far fewer FLOPs,
    # (k_lin, d) intermediate).  one_kv_head (kv_dim == dim_head): original order.
    reassoc = not one_kv_head

    @pl.when(c == 0)
    def _init():
        k_acc[...] = jnp.zeros_like(k_acc)
        if not share_kv:
            v_acc[...] = jnp.zeros_like(v_acc)

    x = x_ref[...]                       # (chunk, d)
    pk = pkT_ref[...]                    # (k_lin, chunk)
    if reassoc:
        k_acc[...] += jnp.dot(pk, x, preferred_element_type=jnp.float32)
        if not share_kv:
            v_acc[...] += jnp.dot(pvT_ref[...], x, preferred_element_type=jnp.float32)
    else:
        kx = jnp.dot(x, wk_ref[...], preferred_element_type=jnp.float32).astype(cdt)
        k_acc[...] += jnp.dot(pk, kx, preferred_element_type=jnp.float32)
        if not share_kv:
            vx = jnp.dot(x, wv_ref[...], preferred_element_type=jnp.float32).astype(cdt)
            v_acc[...] += jnp.dot(pvT_ref[...], vx, preferred_element_type=jnp.float32)

    @pl.when(c == nc - 1)
    def _finalize():
        if reassoc:
            k_ref[...] = jnp.dot(k_acc[...].astype(cdt), wk_ref[...],
                                 preferred_element_type=jnp.float32).astype(k_ref.dtype)
            if not share_kv:
                v_ref[...] = jnp.dot(v_acc[...].astype(cdt), wv_ref[...],
                                     preferred_element_type=jnp.float32).astype(v_ref.dtype)
        else:
            k_ref[...] = k_acc[...].astype(k_ref.dtype)
            if not share_kv:
                v_ref[...] = v_acc[...].astype(v_ref.dtype)


# ------------------------------ pass 2: attention -----------------------------

def _attn_kernel(x_ref, wq_ref, kT_ref, v_ref, wo_ref, bo_ref, o_ref, *,
                 heads, dim_head, one_kv_head, scale):
    cdt = x_ref.dtype
    q = jnp.dot(x_ref[...], wq_ref[...], preferred_element_type=jnp.float32)
    q = (q * scale).astype(cdt)          # scale queries once, not per-head dots
    kT = kT_ref[...]                     # (kv_dim, k_lin), pre-transposed
    vv = v_ref[...]                      # (k_lin, kv_dim)
    # exact reciprocal keeps the f32 demo/check tight; approx (EUP) for bf16
    approx = cdt == jnp.bfloat16

    acc = jnp.zeros((q.shape[0], wo_ref.shape[1]), jnp.float32)   # (tq, d)
    for h in range(heads):
        lo = h * dim_head
        qh = q[:, lo:lo + dim_head]                               # (tq, dh)
        kTh = kT if one_kv_head else kT[lo:lo + dim_head, :]      # (dh, k_lin)
        vh = vv if one_kv_head else vv[:, lo:lo + dim_head]       # (k_lin, dh)
        dots = jnp.dot(qh, kTh, preferred_element_type=jnp.float32)   # (tq, k_lin)
        m = jnp.max(dots, axis=-1, keepdims=True)
        p = jnp.exp(dots - m)                                     # un-normalized, f32
        s = jnp.sum(p, axis=-1, keepdims=True)
        # TODO(synk): non-zero attention dropout would mask `p` via pltpu.prng_random_bits.
        oh = jnp.dot(p.astype(cdt), vh, preferred_element_type=jnp.float32)   # (tq, dh)
        oh = (oh * pl.reciprocal(s, approx=approx)).astype(cdt)
        # accumulate straight into the output projection: no jnp.concatenate
        acc = acc + jnp.dot(oh, wo_ref[lo:lo + dim_head, :],
                            preferred_element_type=jnp.float32)
    o_ref[...] = (acc + bo_ref[...].astype(jnp.float32)).astype(o_ref.dtype)


# ---------------------------------- wrapper -----------------------------------

def _pick_tile(n, target, mult):
    """Largest tile <= target that divides n and is a multiple of `mult`
    (falls back to the full extent, which is always a legal block)."""
    if n <= target:
        return n
    t = (target // mult) * mult
    while t >= mult:
        if n % t == 0:
            return t
        t -= mult
    return n


def linformer_self_attention(x, wq, wk, wv, proj_k, proj_v, wo, bo, *,
                             heads, dim_head, one_kv_head=False, share_kv=False,
                             tq=256, seq_chunk=512, use_bf16=False,
                             vmem_limit_bytes=None):
    """Linformer self-attention forward.

    x: (B, n, dim).  Linear weights stored (in_features, out_features)
    (transposed vs. torch.nn.Linear.weight); proj_k/proj_v: (n, k).
    share_kv=True ignores wv/proj_v (pass None) and reuses wk/proj_k.
    TODO(synk): optional cross-attention `context` input not implemented
    (self-attention path only, dropout=0 inference).
    """
    B, n, d = x.shape
    hd = heads * dim_head
    kv_dim = dim_head if one_kv_head else hd
    k_lin = proj_k.shape[1]
    out_dtype = x.dtype

    assert wq.shape == (d, hd) and wo.shape == (hd, d) and bo.shape == (d,)
    assert wk.shape == (d, kv_dim) and proj_k.shape == (n, k_lin)
    if not share_kv:
        assert wv.shape == (d, kv_dim) and proj_v.shape == (n, k_lin)

    cdt = jnp.bfloat16 if use_bf16 else x.dtype
    xc = x.astype(cdt)
    wq_c, wk_c, wo_c = wq.astype(cdt), wk.astype(cdt), wo.astype(cdt)
    pkT = proj_k.T.astype(cdt)                     # (k_lin, n): row-major projection
    if not share_kv:
        wv_c, pvT = wv.astype(cdt), proj_v.T.astype(cdt)
    bo2 = bo.reshape(1, d).astype(jnp.float32)     # bias added in f32

    cp = {}
    if vmem_limit_bytes is not None:               # e.g. raise on v5e / large configs
        cp["vmem_limit_bytes"] = vmem_limit_bytes

    # ---------------- pass 1: projected K/V, streamed over sequence chunks ----
    chunk = _pick_tile(n, seq_chunk, 128)          # lane dim of the proj^T block
    reassoc = not one_kv_head
    acc_cols = d if reassoc else kv_dim

    in_specs_1 = [
        pl.BlockSpec((None, chunk, d), lambda b, c: (b, c, 0)),       # x chunk
        pl.BlockSpec((k_lin, chunk), lambda b, c: (0, c)),            # proj_k^T
        pl.BlockSpec((d, kv_dim), lambda b, c: (0, 0)),               # Wk
    ]
    args_1 = [xc, pkT, wk_c]
    scratch_1 = [pltpu.VMEM((k_lin, acc_cols), jnp.float32)]
    if share_kv:
        out_shape_1 = jax.ShapeDtypeStruct((B, k_lin, kv_dim), cdt)
        out_specs_1 = pl.BlockSpec((None, k_lin, kv_dim), lambda b, c: (b, 0, 0))
    else:
        in_specs_1 += [
            pl.BlockSpec((k_lin, chunk), lambda b, c: (0, c)),        # proj_v^T
            pl.BlockSpec((d, kv_dim), lambda b, c: (0, 0)),           # Wv
        ]
        args_1 += [pvT, wv_c]
        scratch_1.append(pltpu.VMEM((k_lin, acc_cols), jnp.float32))
        out_shape_1 = (jax.ShapeDtypeStruct((B, k_lin, kv_dim), cdt),
                       jax.ShapeDtypeStruct((B, k_lin, kv_dim), cdt))
        out_specs_1 = [pl.BlockSpec((None, k_lin, kv_dim), lambda b, c: (b, 0, 0)),
                       pl.BlockSpec((None, k_lin, kv_dim), lambda b, c: (b, 0, 0))]

    proj = pl.pallas_call(
        partial(_kv_proj_kernel, one_kv_head=one_kv_head, share_kv=share_kv),
        out_shape=out_shape_1,
        grid_spec=pltpu.PrefetchScalarGridSpec(
            num_scalar_prefetch=0,
            grid=(B, n // chunk),
            in_specs=in_specs_1,
            out_specs=out_specs_1,
            scratch_shapes=scratch_1),
        compiler_params=pltpu.CompilerParams(
            dimension_semantics=("parallel", "arbitrary"), **cp),
    )(*args_1)

    if share_kv:
        k_proj = proj
        v_proj = k_proj
    else:
        k_proj, v_proj = proj

    # One transpose of the *tiny* projected K, outside the attention hot loop,
    # so per-tile QK^T is a plain row-major (tq, dh) x (dh, k_lin) matmul.
    kT = jnp.swapaxes(k_proj, 1, 2)                # (B, kv_dim, k_lin)

    # ---------------- pass 2: attention over large query-row tiles ------------
    tq_eff = _pick_tile(n, tq, 16 if cdt == jnp.bfloat16 else 8)
    scale = float(dim_head) ** -0.5

    return pl.pallas_call(
        partial(_attn_kernel, heads=heads, dim_head=dim_head,
                one_kv_head=one_kv_head, scale=scale),
        out_shape=jax.ShapeDtypeStruct((B, n, d), out_dtype),
        grid_spec=pltpu.PrefetchScalarGridSpec(
            num_scalar_prefetch=0,
            grid=(B, n // tq_eff),
            in_specs=[
                pl.BlockSpec((None, tq_eff, d), lambda b, i: (b, i, 0)),     # x tile
                pl.BlockSpec((d, hd), lambda b, i: (0, 0)),                  # Wq
                pl.BlockSpec((None, kv_dim, k_lin), lambda b, i: (b, 0, 0)),  # K^T
                pl.BlockSpec((None, k_lin, kv_dim), lambda b, i: (b, 0, 0)),  # V
                pl.BlockSpec((hd, d), lambda b, i: (0, 0)),                  # Wo
                pl.BlockSpec((1, d), lambda b, i: (0, 0)),                   # bo
            ],
            out_specs=pl.BlockSpec((None, tq_eff, d), lambda b, i: (b, i, 0)),
        ),
        compiler_params=pltpu.CompilerParams(
            dimension_semantics=("parallel", "parallel"), **cp),
    )(xc, wq_c, kT, v_proj, wo_c, bo2)


# --------------------------------- reference ----------------------------------

def linformer_ref(x, wq, wk, wv, proj_k, proj_v, wo, bo, *,
                  heads, dim_head, one_kv_head=False):
    prec = lax.Precision.HIGHEST
    b, n, d = x.shape
    q = jnp.einsum('bnd,de->bne', x, wq, precision=prec)
    keys = jnp.einsum('bnd,de->bne', x, wk, precision=prec)
    vals = jnp.einsum('bnd,de->bne', x, wv, precision=prec)
    keys = jnp.einsum('bnd,nk->bkd', keys, proj_k, precision=prec)
    vals = jnp.einsum('bnd,nk->bkd', vals, proj_v, precision=prec)
    q = q.reshape(b, n, heads, dim_head).transpose(0, 2, 1, 3)
    kvh = 1 if one_kv_head else heads
    keys = keys.reshape(b, -1, kvh, dim_head).transpose(0, 2, 1, 3)
    vals = vals.reshape(b, -1, kvh, dim_head).transpose(0, 2, 1, 3)
    keys = jnp.broadcast_to(keys, (b, heads, keys.shape[2], dim_head))
    vals = jnp.broadcast_to(vals, (b, heads, vals.shape[2], dim_head))
    dots = jnp.einsum('bhnd,bhkd->bhnk', q, keys, precision=prec) * dim_head ** -0.5
    attn = jax.nn.softmax(dots, axis=-1)
    out = jnp.einsum('bhnk,bhkd->bhnd', attn, vals, precision=prec)
    out = out.transpose(0, 2, 1, 3).reshape(b, n, heads * dim_head)
    return jnp.einsum('bne,ed->bnd', out, wo, precision=prec) + bo


if __name__ == "__main__":
    # small shapes consistent with the module: batch=2, seq_len=16, dim=32,
    # heads=4 (-> dim_head=8), Linformer projection k=8, dropout=0.0
    B, n, dim, heads, k_lin = 2, 16, 32, 4, 8
    dim_head = dim // heads
    hd = heads * dim_head

    key = jax.random.PRNGKey(0)
    kx, kq, kk, kv, kpk, kpv, ko, kob = jax.random.split(key, 8)

    x = jax.random.normal(kx, (B, n, dim), dtype=jnp.float32)

    def uinit(rng, shape, fan):
        lim = 1.0 / math.sqrt(fan)
        return jax.random.uniform(rng, shape, minval=-lim, maxval=lim, dtype=jnp.float32)

    # weights stored (in_features, out_features) (transposed vs torch.nn.Linear.weight)
    wq = uinit(kq, (dim, hd), dim)
    wk = uinit(kk, (dim, hd), dim)
    wv = uinit(kv, (dim, hd), dim)
    proj_k = uinit(kpk, (n, k_lin), k_lin)        # init_: uniform +/- 1/sqrt(k)
    proj_v = uinit(kpv, (n, k_lin), k_lin)
    wo = uinit(ko, (hd, dim), hd)
    bo = uinit(kob, (dim,), hd)

    # ---- default config (multi-head K/V), f32 --------------------------------
    y = linformer_self_attention(x, wq, wk, wv, proj_k, proj_v, wo, bo,
                                 heads=heads, dim_head=dim_head)
    y = jax.block_until_ready(y)
    y_ref = linformer_ref(x, wq, wk, wv, proj_k, proj_v, wo, bo,
                          heads=heads, dim_head=dim_head)
    assert y.shape == (B, n, dim)
    err = float(jnp.max(jnp.abs(y - y_ref)))
    assert jnp.allclose(y, y_ref, atol=5e-4, rtol=5e-4), f"f32 mismatch, max err {err}"

    # ---- bf16 MXU operands with f32 accumulation ------------------------------
    y16 = linformer_self_attention(x, wq, wk, wv, proj_k, proj_v, wo, bo,
                                   heads=heads, dim_head=dim_head, use_bf16=True)
    y16 = jax.block_until_ready(y16)
    err16 = float(jnp.max(jnp.abs(y16.astype(jnp.float32) - y_ref)))
    assert err16 < 5e-2, f"bf16 mismatch, max err {err16}"

    # ---- one_kv_head + share_kv fast path --------------------------------------
    wk1 = uinit(kk, (dim, dim_head), dim)
    y1 = linformer_self_attention(x, wq, wk1, None, proj_k, None, wo, bo,
                                  heads=heads, dim_head=dim_head,
                                  one_kv_head=True, share_kv=True)
    y1 = jax.block_until_ready(y1)
    y1_ref = linformer_ref(x, wq, wk1, wk1, proj_k, proj_k, wo, bo,
                           heads=heads, dim_head=dim_head, one_kv_head=True)
    err1 = float(jnp.max(jnp.abs(y1 - y1_ref)))
    assert jnp.allclose(y1, y1_ref, atol=5e-4, rtol=5e-4), f"share_kv mismatch, max err {err1}"

    print("KERNEL_OK")
</pallas_src>

<mosaic_0001>
module attributes {stable_mosaic.version = 11 : i64} {
  func.func @_kv_proj_kernel(%arg0: i32, %arg1: i32, %arg2: memref<1x16x32xf32, #tpu.memory_space<vmem>>, %arg3: memref<8x16xf32, #tpu.memory_space<vmem>>, %arg4: memref<32x32xf32, #tpu.memory_space<vmem>>, %arg5: memref<8x16xf32, #tpu.memory_space<vmem>>, %arg6: memref<32x32xf32, #tpu.memory_space<vmem>>, %arg7: memref<1x8x32xf32, #tpu.memory_space<vmem>>, %arg8: memref<1x8x32xf32, #tpu.memory_space<vmem>>, %arg9: memref<8x32xf32, #tpu.memory_space<vmem>>, %arg10: memref<8x32xf32, #tpu.memory_space<vmem>>) attributes {dimension_semantics = [#tpu.dimension_semantics<parallel>, #tpu.dimension_semantics<arbitrary>], iteration_bounds = array<i64: 2, 1>, scalar_prefetch = 0 : i64, scratch_operands = 2 : i64, tpu.core_type = #tpu.core_type<tc>, window_params = [{transform_indices = @transform_0, window_bounds = array<i64: 1, 16, 32>}, {transform_indices = @transform_1, window_bounds = array<i64: 8, 16>}, {pipeline_mode = #tpu.pipeline_mode<synchronous>, transform_indices = @transform_2, window_bounds = array<i64: 32, 32>}, {transform_indices = @transform_3, window_bounds = array<i64: 8, 16>}, {pipeline_mode = #tpu.pipeline_mode<synchronous>, transform_indices = @transform_4, window_bounds = array<i64: 32, 32>}, {transform_indices = @transform_5, window_bounds = array<i64: 1, 8, 32>}, {transform_indices = @transform_6, window_bounds = array<i64: 1, 8, 32>}]} {
    %c0_i32 = arith.constant 0 : i32
    %0 = arith.cmpi eq, %arg1, %c0_i32 : i32
    %1 = arith.extui %0 : i1 to i32
    %c0_i32_0 = arith.constant 0 : i32
    %2 = arith.cmpi ne, %1, %c0_i32_0 : i32
    scf.if %2 {
      %cst_18 = arith.constant 0.000000e+00 : f32
      %18 = vector.broadcast %cst_18 : f32 to vector<8x32xf32>
      %c0_19 = arith.constant 0 : index
      %c0_20 = arith.constant 0 : index
      %19 = vector.load %arg9[%c0_19, %c0_20] : memref<8x32xf32, #tpu.memory_space<vmem>>, vector<8x32xf32>
      tpu.vector_store %arg9[%c0_19, %c0_20], %18 {strides = array<i32>} : memref<8x32xf32, #tpu.memory_space<vmem>>, vector<8x32xf32>,
      %cst_21 = arith.constant 0.000000e+00 : f32
      %20 = vector.broadcast %cst_21 : f32 to vector<8x32xf32>
      %c0_22 = arith.constant 0 : index
      %c0_23 = arith.constant 0 : index
      %21 = vector.load %arg10[%c0_22, %c0_23] : memref<8x32xf32, #tpu.memory_space<vmem>>, vector<8x32xf32>
      tpu.vector_store %arg10[%c0_22, %c0_23], %20 {strides = array<i32>} : memref<8x32xf32, #tpu.memory_space<vmem>>, vector<8x32xf32>,
    } else {
    }
    %c0 = arith.constant 0 : index
    %c0_1 = arith.constant 0 : index
    %c0_2 = arith.constant 0 : index
    %3 = vector.load %arg2[%c0, %c0_1, %c0_2] : memref<1x16x32xf32, #tpu.memory_space<vmem>>, vector<1x16x32xf32>
    %4 = vector.shape_cast %3 : vector<1x16x32xf32> to vector<16x32xf32>
    %c0_3 = arith.constant 0 : index
    %c0_4 = arith.constant 0 : index
    %5 = vector.load %arg3[%c0_3, %c0_4] : memref<8x16xf32, #tpu.memory_space<vmem>>, vector<8x16xf32>
    %c0_5 = arith.constant 0 : index
    %c0_6 = arith.constant 0 : index
    %6 = vector.load %arg9[%c0_5, %c0_6] : memref<8x32xf32, #tpu.memory_space<vmem>>, vector<8x32xf32>
    %cst = arith.constant dense<0.000000e+00> : vector<8x32xf32>
    %7 = tpu.matmul %5, %4, %cst {dimension_numbers = #tpu.dot_dimension_numbers<[1], [0], [0], [1], [0, 0, 1, 1], [], []>} : vector<8x16xf32>, vector<16x32xf32>, vector<8x32xf32> -> vector<8x32xf32>
    %8 = arith.addf %6, %7 : vector<8x32xf32>
    %c0_7 = arith.constant 0 : index
    %c0_8 = arith.constant 0 : index
    %9 = vector.load %arg9[%c0_7, %c0_8] : memref<8x32xf32, #tpu.memory_space<vmem>>, vector<8x32xf32>
    tpu.vector_store %arg9[%c0_7, %c0_8], %8 {strides = array<i32>} : memref<8x32xf32, #tpu.memory_space<vmem>>, vector<8x32xf32>,
    %c0_9 = arith.constant 0 : index
    %c0_10 = arith.constant 0 : index
    %10 = vector.load %arg10[%c0_9, %c0_10] : memref<8x32xf32, #tpu.memory_space<vmem>>, vector<8x32xf32>
    %c0_11 = arith.constant 0 : index
    %c0_12 = arith.constant 0 : index
    %11 = vector.load %arg5[%c0_11, %c0_12] : memref<8x16xf32, #tpu.memory_space<vmem>>, vector<8x16xf32>
    %cst_13 = arith.constant dense<0.000000e+00> : vector<8x32xf32>
    %12 = tpu.matmul %11, %4, %cst_13 {dimension_numbers = #tpu.dot_dimension_numbers<[1], [0], [0], [1], [0, 0, 1, 1], [], []>} : vector<8x16xf32>, vector<16x32xf32>, vector<8x32xf32> -> vector<8x32xf32>
    %13 = arith.addf %10, %12 : vector<8x32xf32>
    %c0_14 = arith.constant 0 : index
    %c0_15 = arith.constant 0 : index
    %14 = vector.load %arg10[%c0_14, %c0_15] : memref<8x32xf32, #tpu.memory_space<vmem>>, vector<8x32xf32>
    tpu.vector_store %arg10[%c0_14, %c0_15], %13 {strides = array<i32>} : memref<8x32xf32, #tpu.memory_space<vmem>>, vector<8x32xf32>,
    %c0_i32_16 = arith.constant 0 : i32
    %15 = arith.cmpi eq, %arg1, %c0_i32_16 : i32
    %16 = arith.extui %15 : i1 to i32
    %c0_i32_17 = arith.constant 0 : i32
    %17 = arith.cmpi ne, %16, %c0_i32_17 : i32
    scf.if %17 {
      %c0_18 = arith.constant 0 : index
      %c0_19 = arith.constant 0 : index
      %18 = vector.load %arg9[%c0_18, %c0_19] : memref<8x32xf32, #tpu.memory_space<vmem>>, vector<8x32xf32>
      %c0_20 = arith.constant 0 : index
      %c0_21 = arith.constant 0 : index
      %19 = vector.load %arg4[%c0_20, %c0_21] : memref<32x32xf32, #tpu.memory_space<vmem>>, vector<32x32xf32>
      %cst_22 = arith.constant dense<0.000000e+00> : vector<8x32xf32>
      %20 = tpu.matmul %18, %19, %cst_22 {dimension_numbers = #tpu.dot_dimension_numbers<[1], [0], [0], [1], [0, 0, 1, 1], [], []>} : vector<8x32xf32>, vector<32x32xf32>, vector<8x32xf32> -> vector<8x32xf32>
      %c0_23 = arith.constant 0 : index
      %c0_24 = arith.constant 0 : index
      %c0_25 = arith.constant 0 : index
      %21 = vector.load %arg7[%c0_23, %c0_24, %c0_25] : memref<1x8x32xf32, #tpu.memory_space<vmem>>, vector<1x8x32xf32>
      %22 = vector.shape_cast %21 : vector<1x8x32xf32> to vector<8x32xf32>
      %23 = vector.shape_cast %20 : vector<8x32xf32> to vector<1x8x32xf32>
      tpu.vector_store %arg7[%c0_23, %c0_24, %c0_25], %23 {strides = array<i32>} : memref<1x8x32xf32, #tpu.memory_space<vmem>>, vector<1x8x32xf32>,
      %c0_26 = arith.constant 0 : index
      %c0_27 = arith.constant 0 : index
      %24 = vector.load %arg10[%c0_26, %c0_27] : memref<8x32xf32, #tpu.memory_space<vmem>>, vector<8x32xf32>
      %c0_28 = arith.constant 0 : index
      %c0_29 = arith.constant 0 : index
      %25 = vector.load %arg6[%c0_28, %c0_29] : memref<32x32xf32, #tpu.memory_space<vmem>>, vector<32x32xf32>
      %cst_30 = arith.constant dense<0.000000e+00> : vector<8x32xf32>
      %26 = tpu.matmul %24, %25, %cst_30 {dimension_numbers = #tpu.dot_dimension_numbers<[1], [0], [0], [1], [0, 0, 1, 1], [], []>} : vector<8x32xf32>, vector<32x32xf32>, vector<8x32xf32> -> vector<8x32xf32>
      %c0_31 = arith.constant 0 : index
      %c0_32 = arith.constant 0 : index
      %c0_33 = arith.constant 0 : index
      %27 = vector.load %arg8[%c0_31, %c0_32, %c0_33] : memref<1x8x32xf32, #tpu.memory_space<vmem>>, vector<1x8x32xf32>
      %28 = vector.shape_cast %27 : vector<1x8x32xf32> to vector<8x32xf32>
      %29 = vector.shape_cast %26 : vector<8x32xf32> to vector<1x8x32xf32>
      tpu.vector_store %arg8[%c0_31, %c0_32, %c0_33], %29 {strides = array<i32>} : memref<1x8x32xf32, #tpu.memory_space<vmem>>, vector<1x8x32xf32>,
    } else {
    }
    return
  }
  func.func @transform_0(%arg0: i32, %arg1: i32) -> (i32, i32, i32) {
    %c0_i32 = arith.constant 0 : i32
    %c0_i32_0 = arith.constant 0 : i32
    return %arg0, %arg1, %c0_i32 : i32, i32, i32
  }
  func.func @transform_1(%arg0: i32, %arg1: i32) -> (i32, i32) {
    %c0_i32 = arith.constant 0 : i32
    %c0_i32_0 = arith.constant 0 : i32
    return %c0_i32, %arg1 : i32, i32
  }
  func.func @transform_2(%arg0: i32, %arg1: i32) -> (i32, i32) {
    %c0_i32 = arith.constant 0 : i32
    %c0_i32_0 = arith.constant 0 : i32
    %c0_i32_1 = arith.constant 0 : i32
    return %c0_i32, %c0_i32_0 : i32, i32
  }
  func.func @transform_3(%arg0: i32, %arg1: i32) -> (i32, i32) {
    %c0_i32 = arith.constant 0 : i32
    %c0_i32_0 = arith.constant 0 : i32
    return %c0_i32, %arg1 : i32, i32
  }
  func.func @transform_4(%arg0: i32, %arg1: i32) -> (i32, i32) {
    %c0_i32 = arith.constant 0 : i32
    %c0_i32_0 = arith.constant 0 : i32
    %c0_i32_1 = arith.constant 0 : i32
    return %c0_i32, %c0_i32_0 : i32, i32
  }
  func.func @transform_5(%arg0: i32, %arg1: i32) -> (i32, i32, i32) {
    %c0_i32 = arith.constant 0 : i32
    %c0_i32_0 = arith.constant 0 : i32
    %c0_i32_1 = arith.constant 0 : i32
    return %arg0, %c0_i32, %c0_i32_0 : i32, i32, i32
  }
  func.func @transform_6(%arg0: i32, %arg1: i32) -> (i32, i32, i32) {
    %c0_i32 = arith.constant 0 : i32
    %c0_i32_0 = arith.constant 0 : i32
    %c0_i32_1 = arith.constant 0 : i32
    return %arg0, %c0_i32, %c0_i32_0 : i32, i32, i32
  }
}

</mosaic_0001>

<llo_original>
// kernel: tpu_custom_call.1
$region0: #{tpu_custom_call.1}
  #allocation0 [shape = 'u32[]', space=smem, size = 0x4, offset = 0x4, fixed_abs, tag = 'smem constant byte address 0x4 - core index']
  #allocation1 [shape = 'u32[144,128]{1,0:T(1,128)}', space=vmem, size = 0x12000, scoped, tag = 'internal scratch']
  #allocation2 [shape = 'f32[8,32]{1,0:T(8,128)}', space=vmem, size = 0x1000, scoped, tag = 'scratch operand']
  #allocation3 [shape = 'f32[8,32]{1,0:T(8,128)}', space=vmem, size = 0x1000, scoped, tag = 'scratch operand']
  %s0 = inlined_call_operand.hbm [shape: f32[2,16,32], index: 0, kind: input, shape index: {}]
  %s1 = inlined_call_operand.hbm [shape: f32[8,16], index: 1, kind: input, shape index: {}]
  %s2 = inlined_call_operand.hbm [shape: f32[32,32], index: 2, kind: input, shape index: {}]
  %s3 = inlined_call_operand.vmem [shape: f32[8,16], index: 3, kind: input, shape index: {}]
  %s4 = inlined_call_operand.hbm [shape: f32[32,32], index: 4, kind: input, shape index: {}]
  %s5 = inlined_call_operand.hbm [shape: f32[2,8,32], index: 5, kind: output, shape index: {0}]
  %s6 = inlined_call_operand.hbm [shape: f32[2,8,32], index: 6, kind: output, shape index: {1}]
  %7 = xla_tuple %s5, %s6
  %s8 = sld [smem:[#allocation0]]
  $region85: #{tpu_custom_call.1} parent=0
    _
  %s10 = ssub.s32 1, %s8
  %s11 = scalar_select 0, %s10, %s8
  $region1: #{tpu_custom_call.1} parent=0
    #allocation4 [shape = 'u8[16384]{0}', space=vmem, size = 0x4000, scoped, tag = 'input window, operand 0']
    #allocation5 [shape = 's32[2]{0}', space=sflag, size = 0x8, scoped, tag = 'scoped memory for tpu_custom_call.1']
    #allocation6 [shape = 's32[2]{0}', space=sflag, size = 0x8, scoped, tag = 'scoped memory for tpu_custom_call.1']
    #allocation7 [shape = 'u8[4096]{0}', space=vmem, size = 0x1000, scoped, tag = 'input window, operand 1, single buffered']
    #allocation8 [shape = 's32[1]{0}', space=sflag, size = 0x4, scoped, tag = 'scoped memory for tpu_custom_call.1']
    #allocation9 [shape = 'u8[16384]{0}', space=vmem, size = 0x4000, scoped, tag = 'input window, operand 2, single buffered']
    #allocation10 [shape = 'u8[16384]{0}', space=vmem, size = 0x4000, scoped, tag = 'input window, operand 4, single buffered']
    #allocation11 [shape = 's32[1]{0}', space=sflag, size = 0x4, scoped, tag = 'scoped memory for tpu_custom_call.1']
    #allocation12 [shape = 'u8[8192]{0}', space=vmem, size = 0x2000, scoped, tag = 'output window, operand 0']
    #allocation13 [shape = 'u8[8192]{0}', space=vmem, size = 0x2000, scoped, tag = 'output window, operand 1']
    #allocation14 [shape = 's32[2]{0}', space=sflag, size = 0x8, scoped, tag = 'scoped memory for tpu_custom_call.1']
    %12 = vsyncpa [#allocation5], 0
    %s13 = scalar_lea.sflag [#allocation5], 1
    %14 = vsyncpa %s13, 0
    %15 = vsyncpa [#allocation8], 0
    %16 = vsyncpa [#allocation11], 0
    %17 = vsyncpa [#allocation6], 0
    %s18 = scalar_lea.sflag [#allocation6], 1
    %19 = vsyncpa %s18, 0
    %20 = vsyncpa [#allocation14], 0
    %s21 = scalar_lea.sflag [#allocation14], 1
    %22 = vsyncpa %s21, 0
    loop: start=0, step=1, limit=4
    $region2: #{tpu_custom_call.1} parent=1 // loop_pre_header
      _
    $region3: #{tpu_custom_call.1} parent=1 // loop_header
      %s24 = sphi 0, %s28
      %p25 = scmp.ge.s32.totalorder %s24, 4
      %s31 = sphi 0, %s43
      %s32 = sphi 0, %s39
      %s33 = sphi 0, %s31
      %s34 = sphi 0, %s32
      %s35 = sphi 0, %s33
      %s36 = sphi 0, %s34
      %s48 = sphi 0, %s50
      %s51 = sphi 0, %s48
      %s52 = sphi 0, %s51
      %s68 = sphi 0, %s52
      %s74 = sphi 0, %s76
      %s77 = sphi 0, %s74
      %s78 = sphi 0, %s77
      %s94 = sphi 0, %s78
      %s98 = sphi 0, %s98
      %s100 = sphi 0, %s98
      %s101 = sphi 0, %s100
      %s115 = sphi 0, %s101
      %s121 = sphi 0, %s123
      %s124 = sphi 0, %s121
      %s125 = sphi 0, %s124
      %s141 = sphi 0, %s125
      %s145 = sphi 0, %s145
      %s147 = sphi 0, %s145
      %s148 = sphi 0, %s147
      %s162 = sphi 0, %s148
      %s168 = sphi 0, %s170
      %s171 = sphi 0, %s168
      %s172 = sphi 0, %s171
      %s188 = sphi 0, %s172
      %s194 = sphi 0, %s196
      %s197 = sphi 0, %s194
      %s198 = sphi 0, %s197
      %s214 = sphi 0, %s198
    $region4: #{tpu_custom_call.1} parent=1 // loop_header_branch
      %27 = sbr.rel (%p25) target = $region8
    $region5: #{tpu_custom_call.1} parent=1 // loop_body
      %s29 = ssub.s32 %s24, 1
      %s30 = ssub.s32 %s24, 2
      %s37 = sadd.s32 1, %s32
      %p38 = scmp.ge.s32.totalorder %s37, 1
      %s39 = scalar_select %p38, 0, %s37
      %s40 = sadd.s32 1, %s31
      %s41 = scalar_select %p38, %s40, %s31
      %p42 = scmp.ge.s32.totalorder %s41, 2
      %s43 = scalar_select %p42, 0, %s41
      %s44 = ssub.s32 %s31, %s43
      %s45 = ssub.s32 %s32, %s39
      %s46 = sor.u32 %s44, %s45
      %p47 = scmp.eq.s32.totalorder %s46, 0
      %s49 = sadd.s32 %s48, 1
      %s50 = scalar_select %p47, %s48, %s49
      %p53 = pneg %p47
      %p54 = scmp.eq.s32.totalorder %s24, 1
      %p55 = por %p53, %p54
      %p56 = scmp.ne.s32.totalorder %s48, %s51
      %p57 = scmp.eq.s32.totalorder %s24, 0
      %p58 = por %p56, %p57
      %p59 = scmp.ne.s32.totalorder %s48, %s51
      %p60 = scmp.eq.s32.totalorder %s29, 1
      %p61 = por %p59, %p60
      %p62 = scmp.ne.s32.totalorder %s51, %s52
      %p63 = scmp.eq.s32.totalorder %s29, 0
      %p64 = por %p62, %p63
      %p65 = scmp.ne.s32.totalorder %s51, %s52
      %p66 = scmp.eq.s32.totalorder %s30, 1
      %p67 = por %p65, %p66
      %p69 = scmp.ne.s32.totalorder %s52, %s68
      %p70 = scmp.eq.s32.totalorder %s30, 0
      %p71 = por %p69, %p70
      %s72 = ssub.s32 %s32, %s39
      %p73 = scmp.eq.s32.totalorder %s72, 0
      %s75 = sadd.s32 %s74, 1
      %s76 = scalar_select %p73, %s74, %s75
      %p79 = pneg %p73
      %p80 = scmp.eq.s32.totalorder %s24, 1
      %p81 = por %p79, %p80
      %p82 = scmp.ne.s32.totalorder %s74, %s77
      %p83 = scmp.eq.s32.totalorder %s24, 0
      %p84 = por %p82, %p83
      %p85 = scmp.ne.s32.totalorder %s74, %s77
      %p86 = scmp.eq.s32.totalorder %s29, 1
      %p87 = por %p85, %p86
      %p88 = scmp.ne.s32.totalorder %s77, %s78
      %p89 = scmp.eq.s32.totalorder %s29, 0
      %p90 = por %p88, %p89
      %p91 = scmp.ne.s32.totalorder %s77, %s78
      %p92 = scmp.eq.s32.totalorder %s30, 1
      %p93 = por %p91, %p92
      %p95 = scmp.ne.s32.totalorder %s78, %s94
      %p96 = scmp.eq.s32.totalorder %s30, 0
      %p97 = por %p95, %p96
      %s99 = sadd.s32 %s98, 1
      %p102 = scmp.eq.s32.totalorder %s24, 1
      %p103 = scmp.ne.s32.totalorder %s98, %s100
      %p104 = scmp.eq.s32.totalorder %s24, 0
      %p105 = por %p103, %p104
      %p106 = scmp.ne.s32.totalorder %s98, %s100
      %p107 = scmp.eq.s32.totalorder %s29, 1
      %p108 = por %p106, %p107
      %p109 = scmp.ne.s32.totalorder %s100, %s101
      %p110 = scmp.eq.s32.totalorder %s29, 0
      %p111 = por %p109, %p110
      %p112 = scmp.ne.s32.totalorder %s100, %s101
      %p113 = scmp.eq.s32.totalorder %s30, 1
      %p114 = por %p112, %p113
      %p116 = scmp.ne.s32.totalorder %s101, %s115
      %p117 = scmp.eq.s32.totalorder %s30, 0
      %p118 = por %p116, %p117
      %s119 = ssub.s32 %s32, %s39
      %p120 = scmp.eq.s32.totalorder %s119, 0
      %s122 = sadd.s32 %s121, 1
      %s123 = scalar_select %p120, %s121, %s122
      %p126 = pneg %p120
      %p127 = scmp.eq.s32.totalorder %s24, 1
      %p128 = por %p126, %p127
      %p129 = scmp.ne.s32.totalorder %s121, %s124
      %p130 = scmp.eq.s32.totalorder %s24, 0
      %p131 = por %p129, %p130
      %p132 = scmp.ne.s32.totalorder %s121, %s124
      %p133 = scmp.eq.s32.totalorder %s29, 1
      %p134 = por %p132, %p133
      %p135 = scmp.ne.s32.totalorder %s124, %s125
      %p136 = scmp.eq.s32.totalorder %s29, 0
      %p137 = por %p135, %p136
      %p138 = scmp.ne.s32.totalorder %s124, %s125
      %p139 = scmp.eq.s32.totalorder %s30, 1
      %p140 = por %p138, %p139
      %p142 = scmp.ne.s32.totalorder %s125, %s141
      %p143 = scmp.eq.s32.totalorder %s30, 0
      %p144 = por %p142, %p143
      %s146 = sadd.s32 %s145, 1
      %p149 = scmp.eq.s32.totalorder %s24, 1
      %p150 = scmp.ne.s32.totalorder %s145, %s147
      %p151 = scmp.eq.s32.totalorder %s24, 0
      %p152 = por %p150, %p151
      %p153 = scmp.ne.s32.totalorder %s145, %s147
      %p154 = scmp.eq.s32.totalorder %s29, 1
      %p155 = por %p153, %p154
      %p156 = scmp.ne.s32.totalorder %s147, %s148
      %p157 = scmp.eq.s32.totalorder %s29, 0
      %p158 = por %p156, %p157
      %p159 = scmp.ne.s32.totalorder %s147, %s148
      %p160 = scmp.eq.s32.totalorder %s30, 1
      %p161 = por %p159, %p160
      %p163 = scmp.ne.s32.totalorder %s148, %s162
      %p164 = scmp.eq.s32.totalorder %s30, 0
      %p165 = por %p163, %p164
      %s166 = ssub.s32 %s31, %s43
      %p167 = scmp.eq.s32.totalorder %s166, 0
      %s169 = sadd.s32 %s168, 1
      %s170 = scalar_select %p167, %s168, %s169
      %p173 = pneg %p167
      %p174 = scmp.eq.s32.totalorder %s24, 1
      %p175 = por %p173, %p174
      %p176 = scmp.ne.s32.totalorder %s168, %s171
      %p177 = scmp.eq.s32.totalorder %s24, 0
      %p178 = por %p176, %p177
      %p179 = scmp.ne.s32.totalorder %s168, %s171
      %p180 = scmp.eq.s32.totalorder %s29, 1
      %p181 = por %p179, %p180
      %p182 = scmp.ne.s32.totalorder %s171, %s172
      %p183 = scmp.eq.s32.totalorder %s29, 0
      %p184 = por %p182, %p183
      %p185 = scmp.ne.s32.totalorder %s171, %s172
      %p186 = scmp.eq.s32.totalorder %s30, 1
      %p187 = por %p185, %p186
      %p189 = scmp.ne.s32.totalorder %s172, %s188
      %p190 = scmp.eq.s32.totalorder %s30, 0
      %p191 = por %p189, %p190
      %s192 = ssub.s32 %s31, %s43
      %p193 = scmp.eq.s32.totalorder %s192, 0
      %s195 = sadd.s32 %s194, 1
      %s196 = scalar_select %p193, %s194, %s195
      %p199 = pneg %p193
      %p200 = scmp.eq.s32.totalorder %s24, 1
      %p201 = por %p199, %p200
      %p202 = scmp.ne.s32.totalorder %s194, %s197
      %p203 = scmp.eq.s32.totalorder %s24, 0
      %p204 = por %p202, %p203
      %p205 = scmp.ne.s32.totalorder %s194, %s197
      %p206 = scmp.eq.s32.totalorder %s29, 1
      %p207 = por %p205, %p206
      %p208 = scmp.ne.s32.totalorder %s197, %s198
      %p209 = scmp.eq.s32.totalorder %s29, 0
      %p210 = por %p208, %p209
      %p211 = scmp.ne.s32.totalorder %s197, %s198
      %p212 = scmp.eq.s32.totalorder %s30, 1
      %p213 = por %p211, %p212
      %p215 = scmp.ne.s32.totalorder %s198, %s214
      %p216 = scmp.eq.s32.totalorder %s30, 0
      %p217 = por %p215, %p216
      %p218 = scmp.le.s32.totalorder 1, %s24
      %p219 = scmp.lt.s32.totalorder %s24, 3
      %p220 = pnand %p218, %p219
      %p221 = pneg %p220
      // Predicated region
      $region9: #{tpu_custom_call.1} parent=5 // pred_check
        _
      $region10: #{tpu_custom_call.1} parent=5 // pred_check_branch
        %223 = sbr.rel (%p220) target = $region12
      $region11: #{tpu_custom_call.1} parent=5 // pred_region
        %s224 = ssub.s32 %s24, 1
        // Predicated region
        $region13: #{tpu_custom_call.1} parent=11 // pred_check
          %p225 = pneg %p90
        $region14: #{tpu_custom_call.1} parent=11 // pred_check_branch
          %227 = sbr.rel (%p225) target = $region16
        $region15: #{tpu_custom_call.1} parent=11 // pred_region
          %s229 = ssub.s32 128, 128
          %230 = vsyncadd [#allocation8], %s229
          %s231 = smul.addr %s34, 128
          %s232 = scalar_lea.hbm %s1, %s231
          %s234 = sshll.u32 [#allocation7], 4
          %s235 = int_to_ptr.vmem [resolvable:$true] %s234
          %237 = dma.hbm_to_vmem [thread:$0]  %s232, 128, %s235, [#allocation8]
        $region16: #{tpu_custom_call.1} parent=11 // pred_fallthru
          _
        // Predicated region
        $region17: #{tpu_custom_call.1} parent=11 // pred_check
          %p238 = pneg %p111
        $region18: #{tpu_custom_call.1} parent=11 // pred_check_branch
          %240 = sbr.rel (%p238) target = $region20
        $region19: #{tpu_custom_call.1} parent=11 // pred_region
          %s242 = ssub.s32 512, 512
          %243 = vsyncadd [#allocation8], %s242
          %s244 = sshll.u32 [#allocation9], 4
          %s245 = int_to_ptr.vmem [resolvable:$true] %s244
          %250 = dma.hbm_to_vmem [thread:$0]  %s2, 512, %s245, [#allocation8], 128, 128, 8
        $region20: #{tpu_custom_call.1} parent=11 // pred_fallthru
          _
        // Predicated region
        $region21: #{tpu_custom_call.1} parent=11 // pred_check
          %p251 = pneg %p137
        $region22: #{tpu_custom_call.1} parent=11 // pred_check_branch
          %253 = sbr.rel (%p251) target = $region24
        $region23: #{tpu_custom_call.1} parent=11 // pred_region
          %p254 = scmp.lt.s32.totalorder %s34, 0
          %s255 = scalar_select %p254, %s34, 0
          %s256 = smul.addr %s255, 8
          %s257 = scalar_lea.vmem %s3, %s256
        $region24: #{tpu_custom_call.1} parent=11 // pred_fallthru
          _
        // Predicated region
        $region25: #{tpu_custom_call.1} parent=11 // pred_check
          %p258 = pneg %p158
        $region26: #{tpu_custom_call.1} parent=11 // pred_check_branch
          %260 = sbr.rel (%p258) target = $region28
        $region27: #{tpu_custom_call.1} parent=11 // pred_region
          %s262 = ssub.s32 512, 512
          %263 = vsyncadd [#allocation11], %s262
          %s264 = sshll.u32 [#allocation10], 4
          %s265 = int_to_ptr.vmem [resolvable:$true] %s264
          %270 = dma.hbm_to_vmem [thread:$0]  %s4, 512, %s265, [#allocation11], 128, 128, 8
        $region28: #{tpu_custom_call.1} parent=11 // pred_fallthru
          _
      $region12: #{tpu_custom_call.1} parent=5 // pred_fallthru
        _
      %p271 = scmp.lt.s32.totalorder %s24, 2
      // Predicated region
      $region29: #{tpu_custom_call.1} parent=5 // pred_check
        %p272 = pneg %p271
      $region30: #{tpu_custom_call.1} parent=5 // pred_check_branch
        %274 = sbr.rel (%p272) target = $region32
      $region31: #{tpu_custom_call.1} parent=5 // pred_region
        // Predicated region
        $region33: #{tpu_custom_call.1} parent=31 // pred_check
          %p275 = pneg %p58
        $region34: #{tpu_custom_call.1} parent=31 // pred_check_branch
          %277 = sbr.rel (%p275) target = $region36
        $region35: #{tpu_custom_call.1} parent=31 // pred_region
          %s278 = sand.u32 %s48, 1
          %s279 = scalar_lea.sflag [#allocation5], %s278
          %s280 = sand.u32 %s48, 1
          %s281 = smul.addr %s280, 16
          %s282 = scalar_lea.vmem [#allocation4], %s281
          %s283 = smul.u32 2, %s32
          %s285 = ssub.s32 256, 256
          %286 = vsyncadd %s279, %s285
          %s287 = smul.addr %s31, 2
          %s288 = sadd.s32 %s283, %s287
          %s289 = smul.addr %s288, 128
          %s290 = scalar_lea.hbm %s0, %s289
          %s291 = sshll.u32 %s282, 4
          %s292 = int_to_ptr.vmem [resolvable:$true] %s291
          %297 = dma.hbm_to_vmem [thread:$0]  %s290, 256, %s292, %s279, 128, 128, 8
        $region36: #{tpu_custom_call.1} parent=31 // pred_fallthru
          _
      $region32: #{tpu_custom_call.1} parent=5 // pred_fallthru
        _
      %p298 = scmp.le.s32.totalorder 1, %s24
      %p299 = scmp.lt.s32.totalorder %s24, 3
      %p300 = pnand %p298, %p299
      %p301 = pneg %p300
      // Predicated region
      $region37: #{tpu_custom_call.1} parent=5 // pred_check
        _
      $region38: #{tpu_custom_call.1} parent=5 // pred_check_branch
        %303 = sbr.rel (%p300) target = $region40
      $region39: #{tpu_custom_call.1} parent=5 // pred_region
        %s304 = ssub.s32 %s24, 1
        %s305 = sand.u32 %s51, 1
        %s306 = scalar_lea.sflag [#allocation5], %s305
        %s307 = sand.u32 %s51, 1
        %s308 = smul.addr %s307, 16
        %s309 = scalar_lea.vmem [#allocation4], %s308
        // Predicated region
        $region41: #{tpu_custom_call.1} parent=39 // pred_check
          %p310 = pneg %p64
        $region42: #{tpu_custom_call.1} parent=39 // pred_check_branch
          %312 = sbr.rel (%p310) target = $region44
        $region43: #{tpu_custom_call.1} parent=39 // pred_region
          %313 = dma.done %s306, 256
        $region44: #{tpu_custom_call.1} parent=39 // pred_fallthru
          _
        // Predicated region
        $region45: #{tpu_custom_call.1} parent=39 // pred_check
          %p314 = pneg %p90
        $region46: #{tpu_custom_call.1} parent=39 // pred_check_branch
          %316 = sbr.rel (%p314) target = $region48
        $region47: #{tpu_custom_call.1} parent=39 // pred_region
          %317 = dma.done [#allocation8], 128
        $region48: #{tpu_custom_call.1} parent=39 // pred_fallthru
          _
        // Predicated region
        $region49: #{tpu_custom_call.1} parent=39 // pred_check
          %p318 = pneg %p111
        $region50: #{tpu_custom_call.1} parent=39 // pred_check_branch
          %320 = sbr.rel (%p318) target = $region52
        $region51: #{tpu_custom_call.1} parent=39 // pred_region
          %321 = dma.done [#allocation8], 512
        $region52: #{tpu_custom_call.1} parent=39 // pred_fallthru
          _
        // Predicated region
        $region53: #{tpu_custom_call.1} parent=39 // pred_check
          %p322 = pneg %p158
        $region54: #{tpu_custom_call.1} parent=39 // pred_check_branch
          %324 = sbr.rel (%p322) target = $region56
        $region55: #{tpu_custom_call.1} parent=39 // pred_region
          %325 = dma.done [#allocation11], 512
        $region56: #{tpu_custom_call.1} parent=39 // pred_fallthru
          _
        %s326 = sand.u32 %s51, 1
        %s327 = scalar_lea.sflag [#allocation5], %s326
        %s328 = sand.u32 %s51, 1
        %s329 = smul.addr %s328, 16
        %s330 = scalar_lea.vmem [#allocation4], %s329
        %p331 = pneg %p64
        %p332 = pneg %p61
        %p333 = pneg %p90
        %p334 = pneg %p87
        %p335 = pneg %p111
        %p336 = pneg %p108
        %p337 = scmp.lt.s32.totalorder %s34, 0
        %s338 = scalar_select %p337, %s34, 0
        %s339 = smul.addr %s338, 8
        %s340 = scalar_lea.vmem %s3, %s339
        %p341 = pneg %p137
        %p342 = pneg %p134
        %p343 = pneg %p158
        %p344 = pneg %p155
        %p345 = pneg %p184
        %p346 = pneg %p181
        %s347 = sand.u32 %s171, 1
        %s348 = scalar_lea.sflag [#allocation6], %s347
        %s349 = sand.u32 %s171, 1
        %s350 = smul.addr %s349, 8
        %s351 = scalar_lea.vmem [#allocation12], %s350
        %p352 = pneg %p210
        %p353 = pneg %p207
        %s354 = sand.u32 %s197, 1
        %s355 = scalar_lea.sflag [#allocation14], %s354
        %s356 = sand.u32 %s197, 1
        %s357 = smul.addr %s356, 8
        %s358 = scalar_lea.vmem [#allocation13], %s357
        %s359 = smul.u32 2, %s34
        %p360 = scmp.lt.s32.totalorder %s34, 0
        %s361 = scalar_select %p360, %s34, 0
        %s362 = smul.addr %s361, 8
        %s363 = scalar_lea.vmem %s3, %s362
        %p364 = scmp.eq.s32.totalorder %s34, 0
        // Predicated region
        $region57: #{tpu_custom_call.1} parent=39 // pred_check
          %p365 = pneg %p364
        $region58: #{tpu_custom_call.1} parent=39 // pred_check_branch
          %367 = sbr.rel (%p365) target = $region60
        $region59: #{tpu_custom_call.1} parent=39 // pred_region
          %vm368 = vcmask 261120
          %369 = vst.msk [vmem:[#allocation2] sm:$0xff] %vm368, 0.0
          %370 = vst.msk [vmem:[#allocation3] sm:$0xff] %vm368, 0.0
        $region60: #{tpu_custom_call.1} parent=39 // pred_fallthru
          _
        %v371 = vld [vmem:[%s309] sm:$0xff]
        %v372 = vld [vmem:[%s309 + $0x8] sm:$0xff]
        %v373 = vld [vmem:[#allocation7] sm:$0xff]
        %v374 = vld [vmem:[#allocation2] sm:$0xff]
        %vm375 = vcmask 130048
        %v377 = vsel %vm375, %v373, 0
        %379 = vmatprep.subr.mxu0 0.0
        %380 = vmatpush1.msra.mxu0 %v371
        %381 = vmatprep.subr.mxu0 0.0
        %382 = vmatpush1.msra.mxu0 %v372
        %383 = vmatprep.subr.mxu0 0.0
        %384 = vmatpush1.msra.mxu0 0.0
        %385 = vmatprep.subr.mxu0 0.0
        %386 = vmatpush1.msra.mxu0 0.0
        %387 = vmatprep.subr.mxu0 0.0
        %388 = vmatpush1.msra.mxu0 0.0
        %389 = vmatprep.subr.mxu0 0.0
        %390 = vmatpush1.msra.mxu0 0.0
        %391 = vmatprep.subr.mxu0 0.0
        %392 = vmatpush1.msra.mxu0 0.0
        %393 = vmatprep.subr.mxu0 0.0
        %394 = vmatpush1.msra.mxu0 0.0
        %395 = vmatprep.subr.mxu0 0.0
        %396 = vmatpush1.msra.mxu0 0.0
        %397 = vmatprep.subr.mxu0 0.0
        %398 = vmatpush1.msra.mxu0 0.0
        %399 = vmatprep.subr.mxu0 0.0
        %400 = vmatpush1.msra.mxu0 0.0
        %401 = vmatprep.subr.mxu0 0.0
        %402 = vmatpush1.msra.mxu0 0.0
        %403 = vmatprep.subr.mxu0 0.0
        %404 = vmatpush1.msra.mxu0 0.0
        %405 = vmatprep.subr.mxu0 0.0
        %406 = vmatpush1.msra.mxu0 0.0
        %407 = vmatprep.subr.mxu0 0.0
        %408 = vmatpush1.msra.mxu0 0.0
        %409 = vmatprep.subr.mxu0 0.0
        %410 = vmatpush1.msra.mxu0 0.0
        %411 = vmatprep.subr.mxu0 0.0
        %412 = vmatpush1.msra.mxu0 0.0
        %413 = vmatprep.subr.mxu0 0.0
        %414 = vmatpush1.msra.mxu0 0.0
        %415 = vmatprep.subr.mxu0 0.0
        %416 = vmatpush1.msra.mxu0 0.0
        %417 = vmatprep.subr.mxu0 0.0
        %418 = vmatpush1.msra.mxu0 0.0
        %419 = vmatprep.subr.mxu0 0.0
        %420 = vmatpush1.msra.mxu0 0.0
        %421 = vmatprep.subr.mxu0 0.0
        %422 = vmatpush1.msra.mxu0 0.0
        %423 = vmatprep.subr.mxu0 0.0
        %424 = vmatpush1.msra.mxu0 0.0
        %425 = vmatprep.subr.mxu0 0.0
        %426 = vmatpush1.msra.mxu0 0.0
        %427 = vmatprep.subr.mxu0 0.0
        %428 = vmatpush1.msra.mxu0 0.0
        %429 = vmatprep.subr.mxu0 0.0
        %430 = vmatpush1.msra.mxu0 0.0
        %431 = vmatprep.subr.mxu0 0.0
        %432 = vmatpush1.msra.mxu0 0.0
        %433 = vmatprep.subr.mxu0 0.0
        %434 = vmatpush1.msra.mxu0 0.0
        %435 = vmatprep.subr.mxu0 0.0
        %436 = vmatpush1.msra.mxu0 0.0
        %437 = vmatprep.subr.mxu0 0.0
        %438 = vmatpush1.msra.mxu0 0.0
        %439 = vmatprep.subr.mxu0 0.0
        %440 = vmatpush1.msra.mxu0 0.0
        %441 = vmatprep.subr.mxu0 0.0
        %442 = vmatpush1.msra.mxu0 0.0
        %443 = vmatprep.mubr.f32.mxu0 0.0
        %444 = vmatmul.mubr.f32.gmra.mrb[0].mxu0 %v377
        %v445 = vpop.f32.mrb[0].mxu0
        %v446 = vadd.f32 0.0, %v445
        %v447 = vpop.f32.mrb[0].mxu0
        %448 = vdwg.mxu0
        %v449 = vadd.f32 %v374, %v446
        %vm450 = vcmask 261120
        %451 = vst.msk [vmem:[#allocation2] sm:$0xff] %vm450, %v449
        %v452 = vld [vmem:[#allocation3] sm:$0xff]
        %v453 = vld [vmem:[%s363] sm:$0xff]
        %v455 = vsel %vm375, %v453, 0
        %457 = vmatprep.subr.mxu0 0.0
        %458 = vmatpush1.msra.mxu0 %v371
        %459 = vmatprep.subr.mxu0 0.0
        %460 = vmatpush1.msra.mxu0 %v372
        %461 = vmatprep.subr.mxu0 0.0
        %462 = vmatpush1.msra.mxu0 0.0
        %463 = vmatprep.subr.mxu0 0.0
        %464 = vmatpush1.msra.mxu0 0.0
        %465 = vmatprep.subr.mxu0 0.0
        %466 = vmatpush1.msra.mxu0 0.0
        %467 = vmatprep.subr.mxu0 0.0
        %468 = vmatpush1.msra.mxu0 0.0
        %469 = vmatprep.subr.mxu0 0.0
        %470 = vmatpush1.msra.mxu0 0.0
        %471 = vmatprep.subr.mxu0 0.0
        %472 = vmatpush1.msra.mxu0 0.0
        %473 = vmatprep.subr.mxu0 0.0
        %474 = vmatpush1.msra.mxu0 0.0
        %475 = vmatprep.subr.mxu0 0.0
        %476 = vmatpush1.msra.mxu0 0.0
        %477 = vmatprep.subr.mxu0 0.0
        %478 = vmatpush1.msra.mxu0 0.0
        %479 = vmatprep.subr.mxu0 0.0
        %480 = vmatpush1.msra.mxu0 0.0
        %481 = vmatprep.subr.mxu0 0.0
        %482 = vmatpush1.msra.mxu0 0.0
        %483 = vmatprep.subr.mxu0 0.0
        %484 = vmatpush1.msra.mxu0 0.0
        %485 = vmatprep.subr.mxu0 0.0
        %486 = vmatpush1.msra.mxu0 0.0
        %487 = vmatprep.subr.mxu0 0.0
        %488 = vmatpush1.msra.mxu0 0.0
        %489 = vmatprep.subr.mxu0 0.0
        %490 = vmatpush1.msra.mxu0 0.0
        %491 = vmatprep.subr.mxu0 0.0
        %492 = vmatpush1.msra.mxu0 0.0
        %493 = vmatprep.subr.mxu0 0.0
        %494 = vmatpush1.msra.mxu0 0.0
        %495 = vmatprep.subr.mxu0 0.0
        %496 = vmatpush1.msra.mxu0 0.0
        %497 = vmatprep.subr.mxu0 0.0
        %498 = vmatpush1.msra.mxu0 0.0
        %499 = vmatprep.subr.mxu0 0.0
        %500 = vmatpush1.msra.mxu0 0.0
        %501 = vmatprep.subr.mxu0 0.0
        %502 = vmatpush1.msra.mxu0 0.0
        %503 = vmatprep.subr.mxu0 0.0
        %504 = vmatpush1.msra.mxu0 0.0
        %505 = vmatprep.subr.mxu0 0.0
        %506 = vmatpush1.msra.mxu0 0.0
        %507 = vmatprep.subr.mxu0 0.0
        %508 = vmatpush1.msra.mxu0 0.0
        %509 = vmatprep.subr.mxu0 0.0
        %510 = vmatpush1.msra.mxu0 0.0
        %511 = vmatprep.subr.mxu0 0.0
        %512 = vmatpush1.msra.mxu0 0.0
        %513 = vmatprep.subr.mxu0 0.0
        %514 = vmatpush1.msra.mxu0 0.0
        %515 = vmatprep.subr.mxu0 0.0
        %516 = vmatpush1.msra.mxu0 0.0
        %517 = vmatprep.subr.mxu0 0.0
        %518 = vmatpush1.msra.mxu0 0.0
        %519 = vmatprep.subr.mxu0 0.0
        %520 = vmatpush1.msra.mxu0 0.0
        %521 = vmatprep.mubr.f32.mxu0 0.0
        %522 = vmatmul.mubr.f32.gmra.mrb[0].mxu0 %v455
        %v523 = vpop.f32.mrb[0].mxu0
        %v524 = vadd.f32 0.0, %v523
        %v525 = vpop.f32.mrb[0].mxu0
        %526 = vdwg.mxu0
        %v527 = vadd.f32 %v452, %v524
        %528 = vst.msk [vmem:[#allocation3] sm:$0xff] %vm450, %v527
        // Predicated region
        $region61: #{tpu_custom_call.1} parent=39 // pred_check
          %p529 = pneg %p364
        $region62: #{tpu_custom_call.1} parent=39 // pred_check_branch
          %531 = sbr.rel (%p529) target = $region64
        $region63: #{tpu_custom_call.1} parent=39 // pred_region
          %v532 = vld [vmem:[#allocation2] sm:$0xff]
          %v533 = vld [vmem:[#allocation9] sm:$0xff]
          %v534 = vld [vmem:[#allocation9 + $0x8] sm:$0xff]
          %v535 = vld [vmem:[#allocation9 + $0x10] sm:$0xff]
          %v536 = vld [vmem:[#allocation9 + $0x18] sm:$0xff]
          %v538 = vsel %vm450, %v532, 0
          %540 = vmatprep.subr.mxu0 0.0
          %541 = vmatpush1.msra.mxu0 %v533
          %542 = vmatprep.subr.mxu0 0.0
          %543 = vmatpush1.msra.mxu0 %v534
          %544 = vmatprep.subr.mxu0 0.0
          %545 = vmatpush1.msra.mxu0 %v535
          %546 = vmatprep.subr.mxu0 0.0
          %547 = vmatpush1.msra.mxu0 %v536
          %548 = vmatprep.subr.mxu0 0.0
          %549 = vmatpush1.msra.mxu0 0.0
          %550 = vmatprep.subr.mxu0 0.0
          %551 = vmatpush1.msra.mxu0 0.0
          %552 = vmatprep.subr.mxu0 0.0
          %553 = vmatpush1.msra.mxu0 0.0
          %554 = vmatprep.subr.mxu0 0.0
          %555 = vmatpush1.msra.mxu0 0.0
          %556 = vmatprep.subr.mxu0 0.0
          %557 = vmatpush1.msra.mxu0 0.0
          %558 = vmatprep.subr.mxu0 0.0
          %559 = vmatpush1.msra.mxu0 0.0
          %560 = vmatprep.subr.mxu0 0.0
          %561 = vmatpush1.msra.mxu0 0.0
          %562 = vmatprep.subr.mxu0 0.0
          %563 = vmatpush1.msra.mxu0 0.0
          %564 = vmatprep.subr.mxu0 0.0
          %565 = vmatpush1.msra.mxu0 0.0
          %566 = vmatprep.subr.mxu0 0.0
          %567 = vmatpush1.msra.mxu0 0.0
          %568 = vmatprep.subr.mxu0 0.0
          %569 = vmatpush1.msra.mxu0 0.0
          %570 = vmatprep.subr.mxu0 0.0
          %571 = vmatpush1.msra.mxu0 0.0
          %572 = vmatprep.subr.mxu0 0.0
          %573 = vmatpush1.msra.mxu0 0.0
          %574 = vmatprep.subr.mxu0 0.0
          %575 = vmatpush1.msra.mxu0 0.0
          %576 = vmatprep.subr.mxu0 0.0
          %577 = vmatpush1.msra.mxu0 0.0
          %578 = vmatprep.subr.mxu0 0.0
          %579 = vmatpush1.msra.mxu0 0.0
          %580 = vmatprep.subr.mxu0 0.0
          %581 = vmatpush1.msra.mxu0 0.0
          %582 = vmatprep.subr.mxu0 0.0
          %583 = vmatpush1.msra.mxu0 0.0
          %584 = vmatprep.subr.mxu0 0.0
          %585 = vmatpush1.msra.mxu0 0.0
          %586 = vmatprep.subr.mxu0 0.0
          %587 = vmatpush1.msra.mxu0 0.0
          %588 = vmatprep.subr.mxu0 0.0
          %589 = vmatpush1.msra.mxu0 0.0
          %590 = vmatprep.subr.mxu0 0.0
          %591 = vmatpush1.msra.mxu0 0.0
          %592 = vmatprep.subr.mxu0 0.0
          %593 = vmatpush1.msra.mxu0 0.0
          %594 = vmatprep.subr.mxu0 0.0
          %595 = vmatpush1.msra.mxu0 0.0
          %596 = vmatprep.subr.mxu0 0.0
          %597 = vmatpush1.msra.mxu0 0.0
          %598 = vmatprep.subr.mxu0 0.0
          %599 = vmatpush1.msra.mxu0 0.0
          %600 = vmatprep.subr.mxu0 0.0
          %601 = vmatpush1.msra.mxu0 0.0
          %602 = vmatprep.subr.mxu0 0.0
          %603 = vmatpush1.msra.mxu0 0.0
          %604 = vmatprep.mubr.f32.mxu0 0.0
          %605 = vmatmul.mubr.f32.gmra.mrb[0].mxu0 %v538
          %v606 = vpop.f32.mrb[0].mxu0
          %v607 = vadd.f32 0.0, %v606
          %v608 = vpop.f32.mrb[0].mxu0
          %609 = vdwg.mxu0
          %610 = vst.msk [vmem:[%s351] sm:$0xff] %vm450, %v607
          %v611 = vld [vmem:[#allocation3] sm:$0xff]
          %v612 = vld [vmem:[#allocation10] sm:$0xff]
          %v613 = vld [vmem:[#allocation10 + $0x8] sm:$0xff]
          %v614 = vld [vmem:[#allocation10 + $0x10] sm:$0xff]
          %v615 = vld [vmem:[#allocation10 + $0x18] sm:$0xff]
          %v617 = vsel %vm450, %v611, 0
          %619 = vmatprep.subr.mxu0 0.0
          %620 = vmatpush1.msra.mxu0 %v612
          %621 = vmatprep.subr.mxu0 0.0
          %622 = vmatpush1.msra.mxu0 %v613
          %623 = vmatprep.subr.mxu0 0.0
          %624 = vmatpush1.msra.mxu0 %v614
          %625 = vmatprep.subr.mxu0 0.0
          %626 = vmatpush1.msra.mxu0 %v615
          %627 = vmatprep.subr.mxu0 0.0
          %628 = vmatpush1.msra.mxu0 0.0
          %629 = vmatprep.subr.mxu0 0.0
          %630 = vmatpush1.msra.mxu0 0.0
          %631 = vmatprep.subr.mxu0 0.0
          %632 = vmatpush1.msra.mxu0 0.0
          %633 = vmatprep.subr.mxu0 0.0
          %634 = vmatpush1.msra.mxu0 0.0
          %635 = vmatprep.subr.mxu0 0.0
          %636 = vmatpush1.msra.mxu0 0.0
          %637 = vmatprep.subr.mxu0 0.0
          %638 = vmatpush1.msra.mxu0 0.0
          %639 = vmatprep.subr.mxu0 0.0
          %640 = vmatpush1.msra.mxu0 0.0
          %641 = vmatprep.subr.mxu0 0.0
          %642 = vmatpush1.msra.mxu0 0.0
          %643 = vmatprep.subr.mxu0 0.0
          %644 = vmatpush1.msra.mxu0 0.0
          %645 = vmatprep.subr.mxu0 0.0
          %646 = vmatpush1.msra.mxu0 0.0
          %647 = vmatprep.subr.mxu0 0.0
          %648 = vmatpush1.msra.mxu0 0.0
          %649 = vmatprep.subr.mxu0 0.0
          %650 = vmatpush1.msra.mxu0 0.0
          %651 = vmatprep.subr.mxu0 0.0
          %652 = vmatpush1.msra.mxu0 0.0
          %653 = vmatprep.subr.mxu0 0.0
          %654 = vmatpush1.msra.mxu0 0.0
          %655 = vmatprep.subr.mxu0 0.0
          %656 = vmatpush1.msra.mxu0 0.0
          %657 = vmatprep.subr.mxu0 0.0
          %658 = vmatpush1.msra.mxu0 0.0
          %659 = vmatprep.subr.mxu0 0.0
          %660 = vmatpush1.msra.mxu0 0.0
          %661 = vmatprep.subr.mxu0 0.0
          %662 = vmatpush1.msra.mxu0 0.0
          %663 = vmatprep.subr.mxu0 0.0
          %664 = vmatpush1.msra.mxu0 0.0
          %665 = vmatprep.subr.mxu0 0.0
          %666 = vmatpush1.msra.mxu0 0.0
          %667 = vmatprep.subr.mxu0 0.0
          %668 = vmatpush1.msra.mxu0 0.0
          %669 = vmatprep.subr.mxu0 0.0
          %670 = vmatpush1.msra.mxu0 0.0
          %671 = vmatprep.subr.mxu0 0.0
          %672 = vmatpush1.msra.mxu0 0.0
          %673 = vmatprep.subr.mxu0 0.0
          %674 = vmatpush1.msra.mxu0 0.0
          %675 = vmatprep.subr.mxu0 0.0
          %676 = vmatpush1.msra.mxu0 0.0
          %677 = vmatprep.subr.mxu0 0.0
          %678 = vmatpush1.msra.mxu0 0.0
          %679 = vmatprep.subr.mxu0 0.0
          %680 = vmatpush1.msra.mxu0 0.0
          %681 = vmatprep.subr.mxu0 0.0
          %682 = vmatpush1.msra.mxu0 0.0
          %683 = vmatprep.mubr.f32.mxu0 0.0
          %684 = vmatmul.mubr.f32.gmra.mrb[0].mxu0 %v617
          %v685 = vpop.f32.mrb[0].mxu0
          %v686 = vadd.f32 0.0, %v685
          %v687 = vpop.f32.mrb[0].mxu0
          %688 = vdwg.mxu0
          %689 = vst.msk [vmem:[%s358] sm:$0xff] %vm450, %v686
        $region64: #{tpu_custom_call.1} parent=39 // pred_fallthru
          _
        %s690 = sand.u32 %s171, 1
        %s691 = scalar_lea.sflag [#allocation6], %s690
        %s692 = sand.u32 %s171, 1
        %s693 = smul.addr %s692, 8
        %s694 = scalar_lea.vmem [#allocation12], %s693
        %s695 = sand.u32 %s197, 1
        %s696 = scalar_lea.sflag [#allocation14], %s695
        %s697 = sand.u32 %s197, 1
        %s698 = smul.addr %s697, 8
        %s699 = scalar_lea.vmem [#allocation13], %s698
        // Predicated region
        $region65: #{tpu_custom_call.1} parent=39 // pred_check
          %p700 = pneg %p181
        $region66: #{tpu_custom_call.1} parent=39 // pred_check_branch
          %702 = sbr.rel (%p700) target = $region68
        $region67: #{tpu_custom_call.1} parent=39 // pred_region
          %s704 = ssub.s32 128, 128
          %705 = vsyncadd %s691, %s704
          %s706 = smul.addr %s33, 128
          %s707 = scalar_lea.hbm %s5, %s706
          %s709 = sshll.u32 %s694, 4
          %s710 = int_to_ptr.vmem [resolvable:$true] %s709
          %712 = dma.vmem_to_hbm [thread:$0]  %s710, 128, %s707, %s691
        $region68: #{tpu_custom_call.1} parent=39 // pred_fallthru
          _
        // Predicated region
        $region69: #{tpu_custom_call.1} parent=39 // pred_check
          %p713 = pneg %p207
        $region70: #{tpu_custom_call.1} parent=39 // pred_check_branch
          %715 = sbr.rel (%p713) target = $region72
        $region71: #{tpu_custom_call.1} parent=39 // pred_region
          %s717 = ssub.s32 128, 128
          %718 = vsyncadd %s696, %s717
          %s719 = smul.addr %s33, 128
          %s720 = scalar_lea.hbm %s6, %s719
          %s722 = sshll.u32 %s699, 4
          %s723 = int_to_ptr.vmem [resolvable:$true] %s722
          %725 = dma.vmem_to_hbm [thread:$0]  %s723, 128, %s720, %s696
        $region72: #{tpu_custom_call.1} parent=39 // pred_fallthru
          _
      $region40: #{tpu_custom_call.1} parent=5 // pred_fallthru
        _
      %p726 = scmp.le.s32.totalorder 2, %s24
      // Predicated region
      $region73: #{tpu_custom_call.1} parent=5 // pred_check
        %p727 = pneg %p726
      $region74: #{tpu_custom_call.1} parent=5 // pred_check_branch
        %729 = sbr.rel (%p727) target = $region76
      $region75: #{tpu_custom_call.1} parent=5 // pred_region
        %s730 = ssub.s32 %s24, 2
        // Predicated region
        $region77: #{tpu_custom_call.1} parent=75 // pred_check
          %p731 = pneg %p187
        $region78: #{tpu_custom_call.1} parent=75 // pred_check_branch
          %733 = sbr.rel (%p731) target = $region80
        $region79: #{tpu_custom_call.1} parent=75 // pred_region
          %s734 = sand.u32 %s172, 1
          %s735 = scalar_lea.sflag [#allocation6], %s734
          %s736 = sand.u32 %s172, 1
          %s737 = smul.addr %s736, 8
          %s738 = scalar_lea.vmem [#allocation12], %s737
          %739 = dma.done %s735, 128
        $region80: #{tpu_custom_call.1} parent=75 // pred_fallthru
          _
        // Predicated region
        $region81: #{tpu_custom_call.1} parent=75 // pred_check
          %p740 = pneg %p213
        $region82: #{tpu_custom_call.1} parent=75 // pred_check_branch
          %742 = sbr.rel (%p740) target = $region84
        $region83: #{tpu_custom_call.1} parent=75 // pred_region
          %s743 = sand.u32 %s198, 1
          %s744 = scalar_lea.sflag [#allocation14], %s743
          %s745 = sand.u32 %s198, 1
          %s746 = smul.addr %s745, 8
          %s747 = scalar_lea.vmem [#allocation13], %s746
          %748 = dma.done %s744, 128
        $region84: #{tpu_custom_call.1} parent=75 // pred_fallthru
          _
      $region76: #{tpu_custom_call.1} parent=5 // pred_fallthru
        _
    $region6: #{tpu_custom_call.1} parent=1 // loop_footer
      %s28 = sadd.s32 1, %s24
    $region7: #{tpu_custom_call.1} parent=1 // loop_footer_branch
      %23 = sbr.rel target = $region3
    $region8: #{tpu_custom_call.1} parent=1 // loop_exit
      _
    %749 = vsyncpa [#allocation5], 1
    %s750 = scalar_lea.sflag [#allocation5], 1
    %751 = vsyncpa %s750, 1
    %752 = vsyncpa [#allocation8], 1
    %753 = vsyncpa [#allocation11], 1
    %754 = vsyncpa [#allocation6], 1
    %s755 = scalar_lea.sflag [#allocation6], 1
    %756 = vsyncpa %s755, 1
    %757 = vsyncpa [#allocation14], 1
    %s758 = scalar_lea.sflag [#allocation14], 1
    %759 = vsyncpa %s758, 1

</llo_original>
